<compile_context>
chip_gen: v7x
topology: tpu7x:2x2x1
jax: 0.10.0
libtpu: 0.0.40
codegen_flags: <defaults>
</compile_context>

<pallas_src>
import functools
import numpy as np
import jax
import jax.numpy as jnp
from jax.experimental import pallas as pl
from jax.experimental.pallas import tpu as pltpu


def _round_up(x, m):
    return ((x + m - 1) // m) * m


def _roi_gather_kernel(win_ref, cnt_ref, idx_ref, fmri_ref, out_ref, *, tk):
    """Fused grid: axis 0 enumerates output tiles across ALL ROIs.

    win_ref : SMEM (T,) int32          -- first voxel chunk (units of tk) touched by tile j
    cnt_ref : SMEM (T,) int32          -- number of voxel chunks spanned by tile j
    idx_ref : VMEM (1, nr_block) int32 -- global ROI voxel indices of tile j (-1 = pad)
    fmri_ref: VMEM (B, Nv_pad)         -- whole padded bold signal, resident across the grid
    out_ref : VMEM (B, nr_block)
    """
    j = pl.program_id(0)
    B = fmri_ref.shape[0]
    nr_blk = idx_ref.shape[1]

    idx = idx_ref[...]                       # (1, nr_block) int32
    win0 = win_ref[j]
    n_chunks = cnt_ref[j]                    # >= 1 by construction

    # Hoisted out of the chunk loop (JAX does not CSE broadcast_in_dim).
    iota_v = jax.lax.broadcasted_iota(jnp.int32, (tk, nr_blk), 0)

    def body(c, acc):
        start = pl.multiple_of((win0 + c) * tk, 128)          # tk is a multiple of 128
        fmri_blk = fmri_ref[:, pl.ds(start, tk)]              # (B, tk), lane-aligned
        # One-hot selection matmul: out[b, r] += fmri[b, v] * (v == idx[r]).
        # pad(-1) - start < 0 never matches the non-negative iota.
        onehot = (iota_v == (idx - start)).astype(fmri_blk.dtype)   # (tk, nr_block)
        return acc + jnp.dot(fmri_blk, onehot, preferred_element_type=jnp.float32)

    acc = jax.lax.fori_loop(0, n_chunks, body,
                            jnp.zeros((B, nr_blk), jnp.float32))
    out_ref[...] = acc.astype(out_ref.dtype)


def roi_list_extractor_forward(fmri, roi_dic, *, nr_block=256, tk=128):
    """Pallas equivalent of roi_list_extractor(roi_dic)(fmri): [fmri[:, roi], ...].

    fmri    : (B, Nv) float array
    roi_dic : {name: bool[Nv]}  (static host-side masks, as in the nn.Module)
    """
    B, Nv = fmri.shape
    names = list(roi_dic.keys())
    idx_list = [np.nonzero(np.asarray(roi_dic[n]))[0].astype(np.int32) for n in names]
    nr_list = [int(ix.shape[0]) for ix in idx_list]

    # TODO(synk): reference gather is dtype-agnostic; the one-hot matmul assumes a
    # float dtype (exact for f32/bf16; integer inputs only exact up to 2^24).
    out_dtype = fmri.dtype

    if max(nr_list, default=0) == 0:
        return [jnp.zeros((B, 0), dtype=out_dtype) for _ in names]

    # Lane-dense tile widths (multiples of 128).
    tk = _round_up(min(tk, _round_up(Nv, 128)), 128)
    nr_block = _round_up(min(nr_block, _round_up(max(nr_list), 128)), 128)

    # Pad the voxel axis with zeros so every tk chunk is fully defined.
    Nv_pad = _round_up(Nv, tk)
    if Nv_pad != Nv:
        fmri = jnp.pad(fmri, ((0, 0), (0, Nv_pad - Nv)))

    # Build one fused tile list across all (non-empty) ROIs.
    idx_tiles, win, cnt = [], [], []
    col_spans = []                       # (column offset, Nr) per ROI, or None if empty
    tile_off = 0
    for ix, nr in zip(idx_list, nr_list):
        if nr == 0:
            col_spans.append(None)
            continue
        nr_pad = _round_up(nr, nr_block)
        padded = np.full((nr_pad,), -1, dtype=np.int32)      # -1 sentinel never matches
        padded[:nr] = ix
        n_tiles = nr_pad // nr_block
        for t in range(n_tiles):
            lo = t * nr_block
            hi = min(lo + nr_block, nr)                       # every tile has >= 1 real idx
            first_blk = int(ix[lo]) // tk
            last_blk = int(ix[hi - 1]) // tk                  # sorted -> contiguous window
            win.append(first_blk)
            cnt.append(last_blk - first_blk + 1)
        idx_tiles.append(padded)
        col_spans.append((tile_off * nr_block, nr))
        tile_off += n_tiles

    total_tiles = tile_off
    idx_all = np.concatenate(idx_tiles).reshape(1, total_tiles * nr_block)
    win = np.asarray(win, dtype=np.int32)
    cnt = np.asarray(cnt, dtype=np.int32)
    # NOTE: tiles could be reordered by descending cnt for better 2-TC balance on
    # v7x, at the cost of a host-side column permutation; kept in natural order.

    itemsize = jnp.dtype(out_dtype).itemsize
    est = (2 * B * Nv_pad * itemsize        # resident fmri (worst-case double-buffered)
           + 2 * 2 * nr_block * 4           # idx tiles
           + 2 * B * nr_block * itemsize    # output tiles
           + 2 * tk * nr_block * 4          # iota + one-hot temporaries
           + B * nr_block * 4)              # f32 accumulator carry
    vmem_limit = int(min(48 * 1024 * 1024, max(2 * est, 16 * 1024 * 1024)))

    kernel = functools.partial(_roi_gather_kernel, tk=tk)

    out = pl.pallas_call(
        kernel,
        out_shape=jax.ShapeDtypeStruct((B, total_tiles * nr_block), out_dtype),
        grid_spec=pltpu.PrefetchScalarGridSpec(
            num_scalar_prefetch=2,
            grid=(total_tiles,),
            in_specs=[
                # ROI indices of this output tile.
                pl.BlockSpec((1, nr_block), lambda j, win_ref, cnt_ref: (0, j)),
                # Whole fmri, constant block index -> DMA'd once, stays resident.
                pl.BlockSpec((B, Nv_pad), lambda j, win_ref, cnt_ref: (0, 0)),
            ],
            out_specs=pl.BlockSpec((B, nr_block),
                                   lambda j, win_ref, cnt_ref: (0, j)),
        ),
        compiler_params=pltpu.CompilerParams(
            dimension_semantics=("parallel",),     # independent tiles; v7x 2-TC shardable
            vmem_limit_bytes=vmem_limit,
        ),
    )(jnp.asarray(win), jnp.asarray(cnt), jnp.asarray(idx_all), fmri)

    results = []
    for span in col_spans:
        if span is None:
            results.append(jnp.zeros((B, 0), dtype=out_dtype))
        else:
            off, nr = span
            results.append(out[:, off:off + nr])
    return results


def roi_extractor_forward(fmri, roi_mask, *, nr_block=256, tk=128):
    """Pallas equivalent of roi_extractor(roi)(fmri) == fmri[:, roi]."""
    return roi_list_extractor_forward(fmri, {"roi": roi_mask},
                                      nr_block=nr_block, tk=tk)[0]


if __name__ == "__main__":
    key = jax.random.PRNGKey(0)
    B, Nv = 2, 1000   # small; Nv not a multiple of 128 to exercise voxel padding

    k1, k2, k3, k4 = jax.random.split(key, 4)
    fmri = jax.random.normal(k1, (B, Nv), dtype=jnp.float32)

    def make_mask(k, n_true):
        perm = np.asarray(jax.random.permutation(k, Nv))
        m = np.zeros((Nv,), dtype=bool)
        m[np.sort(perm[:n_true])] = True
        return m

    # Dict of ROIs with assorted sizes (exercises nr_block padding and small ROIs).
    roi_dic = {
        "V1": make_mask(k2, 200),
        "V2": make_mask(k3, 128),
        "FFA": make_mask(k4, 37),
    }

    outs = roi_list_extractor_forward(fmri, roi_dic)
    outs = jax.block_until_ready(outs)

    # Single-ROI path (roi_extractor) as well.
    single = jax.block_until_ready(roi_extractor_forward(fmri, roi_dic["V1"]))

    fmri_np = np.asarray(fmri)
    for out, (name, mask) in zip(outs, roi_dic.items()):
        np.testing.assert_allclose(np.asarray(out), fmri_np[:, mask],
                                   rtol=1e-6, atol=1e-6)
    np.testing.assert_allclose(np.asarray(single), fmri_np[:, roi_dic["V1"]],
                               rtol=1e-6, atol=1e-6)

    print("KERNEL_OK")
</pallas_src>

<mosaic_0001>
module attributes {stable_mosaic.version = 11 : i64} {
  func.func @_roi_gather_kernel(%arg0: i32, %arg1: memref<3xi32, #tpu.memory_space<smem>>, %arg2: memref<3xi32, #tpu.memory_space<smem>>, %arg3: memref<1x256xi32, #tpu.memory_space<vmem>>, %arg4: memref<2x1024xf32, #tpu.memory_space<vmem>>, %arg5: memref<2x256xf32, #tpu.memory_space<vmem>>) attributes {dimension_semantics = [#tpu.dimension_semantics<parallel>], iteration_bounds = array<i64: 3>, scalar_prefetch = 2 : i64, scratch_operands = 0 : i64, tpu.core_type = #tpu.core_type<tc>, window_params = [{transform_indices = @transform_0, window_bounds = array<i64: 1, 256>}, {pipeline_mode = #tpu.pipeline_mode<synchronous>, transform_indices = @transform_1, window_bounds = array<i64: 2, 1024>}, {transform_indices = @transform_2, window_bounds = array<i64: 2, 256>}]} {
    %c0 = arith.constant 0 : index
    %c0_0 = arith.constant 0 : index
    %0 = vector.load %arg3[%c0, %c0_0] : memref<1x256xi32, #tpu.memory_space<vmem>>, vector<1x256xi32>
    %1 = arith.index_cast %arg0 : i32 to index
    %2 = memref.load %arg1[%1] : memref<3xi32, #tpu.memory_space<smem>>
    %3 = arith.index_cast %arg0 : i32 to index
    %4 = memref.load %arg2[%3] : memref<3xi32, #tpu.memory_space<smem>>
    %5 = tpu.iota {dimensions = array<i32: 0>} : vector<128x256xi32>
    %cst = arith.constant 0.000000e+00 : f32
    %6 = vector.broadcast %cst : f32 to vector<2x256xf32>
    %c0_i32 = arith.constant 0 : i32
    %7 = arith.subi %4, %c0_i32 : i32
    %8 = arith.addi %c0_i32, %7 : i32
    %c1_i32 = arith.constant 1 : i32
    %9 = scf.for %arg6 = %c0_i32 to %8 step %c1_i32 iter_args(%arg7 = %6) -> (vector<2x256xf32>)  : i32 {
      %11 = arith.addi %2, %arg6 : i32
      %c128_i32 = arith.constant 128 : i32
      %12 = arith.muli %11, %c128_i32 : i32
      %13 = tpu.assume_multiple %12, 128 : i32
      %c0_3 = arith.constant 0 : index
      %14 = arith.index_cast %13 : i32 to index
      %15 = vector.load %arg4[%c0_3, %14] : memref<2x1024xf32, #tpu.memory_space<vmem>>, vector<2x128xf32>
      %16 = vector.broadcast %13 : i32 to vector<1x256xi32>
      %17 = arith.subi %0, %16 : vector<1x256xi32>
      %18 = vector.broadcast %17 : vector<1x256xi32> to vector<128x256xi32>
      %19 = arith.cmpi eq, %5, %18 : vector<128x256xi32>
      %20 = arith.extui %19 : vector<128x256xi1> to vector<128x256xi32>
      %21 = arith.sitofp %20 : vector<128x256xi32> to vector<128x256xf32>
      %cst_4 = arith.constant dense<0.000000e+00> : vector<2x256xf32>
      %22 = tpu.matmul %15, %21, %cst_4 {dimension_numbers = #tpu.dot_dimension_numbers<[1], [0], [0], [1], [0, 0, 1, 1], [], []>} : vector<2x128xf32>, vector<128x256xf32>, vector<2x256xf32> -> vector<2x256xf32>
      %23 = arith.addf %arg7, %22 : vector<2x256xf32>
      scf.yield %23 : vector<2x256xf32>
    }
    %c0_1 = arith.constant 0 : index
    %c0_2 = arith.constant 0 : index
    %10 = vector.load %arg5[%c0_1, %c0_2] : memref<2x256xf32, #tpu.memory_space<vmem>>, vector<2x256xf32>
    tpu.vector_store %arg5[%c0_1, %c0_2], %9 {strides = array<i32>} : memref<2x256xf32, #tpu.memory_space<vmem>>, vector<2x256xf32>,
    return
  }
  func.func @transform_0(%arg0: i32, %arg1: memref<3xi32, #tpu.memory_space<smem>>, %arg2: memref<3xi32, #tpu.memory_space<smem>>) -> (i32, i32) {
    %c0_i32 = arith.constant 0 : i32
    %c0_i32_0 = arith.constant 0 : i32
    return %c0_i32, %arg0 : i32, i32
  }
  func.func @transform_1(%arg0: i32, %arg1: memref<3xi32, #tpu.memory_space<smem>>, %arg2: memref<3xi32, #tpu.memory_space<smem>>) -> (i32, i32) {
    %c0_i32 = arith.constant 0 : i32
    %c0_i32_0 = arith.constant 0 : i32
    %c0_i32_1 = arith.constant 0 : i32
    return %c0_i32, %c0_i32_0 : i32, i32
  }
  func.func @transform_2(%arg0: i32, %arg1: memref<3xi32, #tpu.memory_space<smem>>, %arg2: memref<3xi32, #tpu.memory_space<smem>>) -> (i32, i32) {
    %c0_i32 = arith.constant 0 : i32
    %c0_i32_0 = arith.constant 0 : i32
    return %c0_i32, %arg0 : i32, i32
  }
}

</mosaic_0001>

<llo_original>
// kernel: tpu_custom_call.1
$region0: #{tpu_custom_call.1}
  #allocation0 [shape = 'u32[]', space=smem, size = 0x4, offset = 0x4, fixed_abs, tag = 'smem constant byte address 0x4 - core index']
  #allocation1 [shape = 'u32[144,128]{1,0:T(1,128)}', space=vmem, size = 0x12000, scoped, tag = 'internal scratch']
  #allocation2 [shape = 's32[1]{0}', space=sflag, size = 0x4, scoped, tag = 'scoped memory for tpu_custom_call.1']
  #allocation3 [shape = 'u8[512]{0}', space=smem, size = 0x200, scoped, tag = 'prefetched SMEM operand 0']
  #allocation4 [shape = 'u8[512]{0}', space=smem, size = 0x200, scoped, tag = 'prefetched SMEM operand 1']
  %s0 = inlined_call_operand.hbm [shape: s32[3], index: 0, kind: input, shape index: {}]
  %s1 = inlined_call_operand.vmem [shape: s32[3], index: 1, kind: input, shape index: {}]
  %s2 = inlined_call_operand.vmem [shape: s32[1,768], index: 2, kind: input, shape index: {}]
  %s3 = inlined_call_operand.hbm [shape: f32[2,1024], index: 3, kind: input, shape index: {}]
  %s4 = inlined_call_operand.hbm [shape: f32[2,768], index: 4, kind: output, shape index: {}]
  %s5 = sld [smem:[#allocation0]]
  $region52: #{tpu_custom_call.1} parent=0
    _
  %s7 = ssub.s32 1, %s5
  %s8 = scalar_select 0, %s7, %s5
  %10 = dma.hbm_to_smem %s0, 16, [#allocation3], [#allocation2]
  %s11 = sshll.u32 %s1, 4
  %s12 = int_to_ptr.vmem [resolvable:$true] %s11
  %14 = dma.vmem_to_smem %s12, 16, [#allocation4], [#allocation2]
  %15 = dma.done [#allocation2], 32
  %16 = sfence
  $region1: #{tpu_custom_call.1} parent=0
    #allocation5 [shape = 'u8[8192]{0}', space=vmem, size = 0x2000, scoped, tag = 'input window, operand 3, single buffered']
    #allocation6 [shape = 's32[2]{0}', space=sflag, size = 0x8, scoped, tag = 'scoped memory for tpu_custom_call.1']
    #allocation7 [shape = 's32[2]{0}', space=sflag, size = 0x8, scoped, tag = 'scoped memory for tpu_custom_call.1']
    #allocation8 [shape = 'u8[4096]{0}', space=vmem, size = 0x1000, scoped, tag = 'output window, operand 0']
    %17 = vsyncpa [#allocation6], 0
    %18 = vsyncpa [#allocation7], 0
    %s19 = scalar_lea.sflag [#allocation7], 1
    %20 = vsyncpa %s19, 0
    loop: start=0, step=1, limit=5
    $region2: #{tpu_custom_call.1} parent=1 // loop_pre_header
      _
    $region3: #{tpu_custom_call.1} parent=1 // loop_header
      %s22 = sphi 0, %s26
      %p23 = scmp.ge.s32.totalorder %s22, 5
      %s32 = sphi 0, %s34
      %s35 = sphi 0, %s32
      %s36 = sphi 0, %s35
      %s52 = sphi 0, %s36
      %s56 = sphi 0, %s56
      %s58 = sphi 0, %s56
      %s59 = sphi 0, %s58
      %s73 = sphi 0, %s59
      %s79 = sphi 0, %s81
      %s82 = sphi 0, %s79
      %s83 = sphi 0, %s82
      %s99 = sphi 0, %s83
    $region4: #{tpu_custom_call.1} parent=1 // loop_header_branch
      %25 = sbr.rel (%p23) target = $region8
    $region5: #{tpu_custom_call.1} parent=1 // loop_body
      %s27 = ssub.s32 %s22, 1
      %s28 = ssub.s32 %s22, 2
      %s29 = sadd.s32 %s22, 1
      %s30 = ssub.s32 %s22, %s29
      %p31 = scmp.eq.s32.totalorder %s30, 0
      %s33 = sadd.s32 %s32, 1
      %s34 = scalar_select %p31, %s32, %s33
      %p37 = pneg %p31
      %p38 = scmp.eq.s32.totalorder %s22, 2
      %p39 = por %p37, %p38
      %p40 = scmp.ne.s32.totalorder %s32, %s35
      %p41 = scmp.eq.s32.totalorder %s22, 0
      %p42 = por %p40, %p41
      %p43 = scmp.ne.s32.totalorder %s32, %s35
      %p44 = scmp.eq.s32.totalorder %s27, 2
      %p45 = por %p43, %p44
      %p46 = scmp.ne.s32.totalorder %s35, %s36
      %p47 = scmp.eq.s32.totalorder %s27, 0
      %p48 = por %p46, %p47
      %p49 = scmp.ne.s32.totalorder %s35, %s36
      %p50 = scmp.eq.s32.totalorder %s28, 2
      %p51 = por %p49, %p50
      %p53 = scmp.ne.s32.totalorder %s36, %s52
      %p54 = scmp.eq.s32.totalorder %s28, 0
      %p55 = por %p53, %p54
      %s57 = sadd.s32 %s56, 1
      %p60 = scmp.eq.s32.totalorder %s22, 2
      %p61 = scmp.ne.s32.totalorder %s56, %s58
      %p62 = scmp.eq.s32.totalorder %s22, 0
      %p63 = por %p61, %p62
      %p64 = scmp.ne.s32.totalorder %s56, %s58
      %p65 = scmp.eq.s32.totalorder %s27, 2
      %p66 = por %p64, %p65
      %p67 = scmp.ne.s32.totalorder %s58, %s59
      %p68 = scmp.eq.s32.totalorder %s27, 0
      %p69 = por %p67, %p68
      %p70 = scmp.ne.s32.totalorder %s58, %s59
      %p71 = scmp.eq.s32.totalorder %s28, 2
      %p72 = por %p70, %p71
      %p74 = scmp.ne.s32.totalorder %s59, %s73
      %p75 = scmp.eq.s32.totalorder %s28, 0
      %p76 = por %p74, %p75
      %s77 = ssub.s32 %s22, %s29
      %p78 = scmp.eq.s32.totalorder %s77, 0
      %s80 = sadd.s32 %s79, 1
      %s81 = scalar_select %p78, %s79, %s80
      %p84 = pneg %p78
      %p85 = scmp.eq.s32.totalorder %s22, 2
      %p86 = por %p84, %p85
      %p87 = scmp.ne.s32.totalorder %s79, %s82
      %p88 = scmp.eq.s32.totalorder %s22, 0
      %p89 = por %p87, %p88
      %p90 = scmp.ne.s32.totalorder %s79, %s82
      %p91 = scmp.eq.s32.totalorder %s27, 2
      %p92 = por %p90, %p91
      %p93 = scmp.ne.s32.totalorder %s82, %s83
      %p94 = scmp.eq.s32.totalorder %s27, 0
      %p95 = por %p93, %p94
      %p96 = scmp.ne.s32.totalorder %s82, %s83
      %p97 = scmp.eq.s32.totalorder %s28, 2
      %p98 = por %p96, %p97
      %p100 = scmp.ne.s32.totalorder %s83, %s99
      %p101 = scmp.eq.s32.totalorder %s28, 0
      %p102 = por %p100, %p101
      %p103 = scmp.le.s32.totalorder 1, %s22
      %p104 = scmp.lt.s32.totalorder %s22, 4
      %p105 = pnand %p103, %p104
      %p106 = pneg %p105
      // Predicated region
      $region9: #{tpu_custom_call.1} parent=5 // pred_check
        _
      $region10: #{tpu_custom_call.1} parent=5 // pred_check_branch
        %108 = sbr.rel (%p105) target = $region12
      $region11: #{tpu_custom_call.1} parent=5 // pred_region
        %s109 = ssub.s32 %s22, 1
        // Predicated region
        $region13: #{tpu_custom_call.1} parent=11 // pred_check
          %p110 = pneg %p69
        $region14: #{tpu_custom_call.1} parent=11 // pred_check_branch
          %112 = sbr.rel (%p110) target = $region16
        $region15: #{tpu_custom_call.1} parent=11 // pred_region
          %s114 = ssub.s32 256, 256
          %115 = vsyncadd [#allocation6], %s114
          %s117 = sshll.u32 [#allocation5], 4
          %s118 = int_to_ptr.vmem [resolvable:$true] %s117
          %120 = dma.hbm_to_vmem [thread:$0]  %s3, 256, %s118, [#allocation6]
        $region16: #{tpu_custom_call.1} parent=11 // pred_fallthru
          _
      $region12: #{tpu_custom_call.1} parent=5 // pred_fallthru
        _
      %p121 = scmp.lt.s32.totalorder %s22, 3
      // Predicated region
      $region17: #{tpu_custom_call.1} parent=5 // pred_check
        %p122 = pneg %p121
      $region18: #{tpu_custom_call.1} parent=5 // pred_check_branch
        %124 = sbr.rel (%p122) target = $region20
      $region19: #{tpu_custom_call.1} parent=5 // pred_region
        // Predicated region
        $region21: #{tpu_custom_call.1} parent=19 // pred_check
          %p125 = pneg %p42
        $region22: #{tpu_custom_call.1} parent=19 // pred_check_branch
          %127 = sbr.rel (%p125) target = $region24
        $region23: #{tpu_custom_call.1} parent=19 // pred_region
          %s128 = smul.u32 2, %s22
          %p129 = scmp.lt.s32.totalorder %s128, 5
          %s130 = scalar_select %p129, %s128, 5
          %s131 = scalar_lea.vmem %s2, %s130
          %s132 = smul.u32 2, %s22
        $region24: #{tpu_custom_call.1} parent=19 // pred_fallthru
          _
      $region20: #{tpu_custom_call.1} parent=5 // pred_fallthru
        _
      %p133 = scmp.le.s32.totalorder 1, %s22
      %p134 = scmp.lt.s32.totalorder %s22, 4
      %p135 = pnand %p133, %p134
      %p136 = pneg %p135
      // Predicated region
      $region25: #{tpu_custom_call.1} parent=5 // pred_check
        _
      $region26: #{tpu_custom_call.1} parent=5 // pred_check_branch
        %138 = sbr.rel (%p135) target = $region28
      $region27: #{tpu_custom_call.1} parent=5 // pred_region
        %s139 = ssub.s32 %s22, 1
        // Predicated region
        $region29: #{tpu_custom_call.1} parent=27 // pred_check
          %p140 = pneg %p69
        $region30: #{tpu_custom_call.1} parent=27 // pred_check_branch
          %142 = sbr.rel (%p140) target = $region32
        $region31: #{tpu_custom_call.1} parent=27 // pred_region
          %143 = dma.done [#allocation6], 256
        $region32: #{tpu_custom_call.1} parent=27 // pred_fallthru
          _
        %s144 = smul.u32 2, %s27
        %p145 = scmp.lt.s32.totalorder %s144, 5
        %s146 = scalar_select %p145, %s144, 5
        %s147 = scalar_lea.vmem %s2, %s146
        %p148 = pneg %p48
        %p149 = pneg %p45
        %p150 = pneg %p69
        %p151 = pneg %p66
        %p152 = pneg %p95
        %p153 = pneg %p92
        %s154 = sand.u32 %s82, 1
        %s155 = scalar_lea.sflag [#allocation7], %s154
        %s156 = sand.u32 %s82, 1
        %s157 = smul.addr %s156, 4
        %s158 = scalar_lea.vmem [#allocation8], %s157
        %s159 = smul.u32 2, %s27
        %p160 = scmp.lt.s32.totalorder %s159, 5
        %s161 = scalar_select %p160, %s159, 5
        %s162 = scalar_lea.vmem %s2, %s161
        %s163 = smul.u32 2, %s27
        %s164 = smul.u32 2, %s27
        %v165 = vld [vmem:[%s162] sm:$0x3]
        %s166 = sld [smem:[#allocation3 + %s27]]
        %s167 = sld [smem:[#allocation4 + %s27]]
        %v168 = vlaneseq
        %v169 = vshrl.u32 %v168, 7
        %v170 = vadd.s32 %v169, 8
        %v171 = vadd.s32 %v169, 16
        %v172 = vadd.s32 %v169, 24
        %v173 = vadd.s32 %v169, 32
        %v174 = vadd.s32 %v169, 40
        %v175 = vadd.s32 %v169, 48
        %v176 = vadd.s32 %v169, 56
        %v177 = vadd.s32 %v169, 64
        %v178 = vadd.s32 %v169, 72
        %v179 = vadd.s32 %v169, 80
        %v180 = vadd.s32 %v169, 88
        %v181 = vadd.s32 %v169, 96
        %v182 = vadd.s32 %v169, 104
        %v183 = vadd.s32 %v169, 112
        %v184 = vadd.s32 %v169, 120
        // While loop
        $region33: #{tpu_custom_call.1} parent=27 // loop_pre_header
          _
        $region34: #{tpu_custom_call.1} parent=27 // loop_header
          %s186 = sphi 0, %s188
          %p187 = scmp.ge.s32.totalorder %s186, %s167
          %v191 = vphi 0.0, %v377
          %v192 = vphi 0.0, %v378
        $region35: #{tpu_custom_call.1} parent=27 // loop_header_branch
          %190 = sbr.rel (%p187) target = $region39
        $region36: #{tpu_custom_call.1} parent=27 // loop_body
          %s193 = sadd.s32 %s166, %s186
          %s194 = smul.u32 %s193, 128
          %s195 = sshra.s32 %s194, 7
          %s196 = sand.u32 %s194, 127
          %s197 = smul.addr %s195, 2
          %s198 = scalar_lea.vmem [#allocation5], %s197
          %v199 = vld [vmem:[%s198] sm:$0x3]
          %v200 = vstv %s194
          %v201 = vsub.s32 %v165, %v200
          %v202 = vlaneseq
          %v203 = vshrl.u32 %v202, 7
          %v204 = vsub.s32 0, %v203
          %v205 = vrot.slane %v201, %v204
          %v206 = vlaneseq
          %v207 = vshrl.u32 %v206, 7
          %v208 = vsub.s32 1, %v207
          %v209 = vrot.slane %v201, %v208
          %vm210 = vcmp.eq.s32.totalorder %v169, %v205
          %vm211 = vcmp.eq.s32.totalorder %v169, %v209
          %vm212 = vcmp.eq.s32.totalorder %v170, %v205
          %vm213 = vcmp.eq.s32.totalorder %v170, %v209
          %vm214 = vcmp.eq.s32.totalorder %v171, %v205
          %vm215 = vcmp.eq.s32.totalorder %v171, %v209
          %vm216 = vcmp.eq.s32.totalorder %v172, %v205
          %vm217 = vcmp.eq.s32.totalorder %v172, %v209
          %vm218 = vcmp.eq.s32.totalorder %v173, %v205
          %vm219 = vcmp.eq.s32.totalorder %v173, %v209
          %vm220 = vcmp.eq.s32.totalorder %v174, %v205
          %vm221 = vcmp.eq.s32.totalorder %v174, %v209
          %vm222 = vcmp.eq.s32.totalorder %v175, %v205
          %vm223 = vcmp.eq.s32.totalorder %v175, %v209
          %vm224 = vcmp.eq.s32.totalorder %v176, %v205
          %vm225 = vcmp.eq.s32.totalorder %v176, %v209
          %vm226 = vcmp.eq.s32.totalorder %v177, %v205
          %vm227 = vcmp.eq.s32.totalorder %v177, %v209
          %vm228 = vcmp.eq.s32.totalorder %v178, %v205
          %vm229 = vcmp.eq.s32.totalorder %v178, %v209
          %vm230 = vcmp.eq.s32.totalorder %v179, %v205
          %vm231 = vcmp.eq.s32.totalorder %v179, %v209
          %vm232 = vcmp.eq.s32.totalorder %v180, %v205
          %vm233 = vcmp.eq.s32.totalorder %v180, %v209
          %vm234 = vcmp.eq.s32.totalorder %v181, %v205
          %vm235 = vcmp.eq.s32.totalorder %v181, %v209
          %vm236 = vcmp.eq.s32.totalorder %v182, %v205
          %vm237 = vcmp.eq.s32.totalorder %v182, %v209
          %vm238 = vcmp.eq.s32.totalorder %v183, %v205
          %vm239 = vcmp.eq.s32.totalorder %v183, %v209
          %vm240 = vcmp.eq.s32.totalorder %v184, %v205
          %vm241 = vcmp.eq.s32.totalorder %v184, %v209
          %v242 = vsel %vm210, 1, 0
          %v243 = vsel %vm211, 1, 0
          %v244 = vsel %vm212, 1, 0
          %v245 = vsel %vm213, 1, 0
          %v246 = vsel %vm214, 1, 0
          %v247 = vsel %vm215, 1, 0
          %v248 = vsel %vm216, 1, 0
          %v249 = vsel %vm217, 1, 0
          %v250 = vsel %vm218, 1, 0
          %v251 = vsel %vm219, 1, 0
          %v252 = vsel %vm220, 1, 0
          %v253 = vsel %vm221, 1, 0
          %v254 = vsel %vm222, 1, 0
          %v255 = vsel %vm223, 1, 0
          %v256 = vsel %vm224, 1, 0
          %v257 = vsel %vm225, 1, 0
          %v258 = vsel %vm226, 1, 0
          %v259 = vsel %vm227, 1, 0
          %v260 = vsel %vm228, 1, 0
          %v261 = vsel %vm229, 1, 0
          %v262 = vsel %vm230, 1, 0
          %v263 = vsel %vm231, 1, 0
          %v264 = vsel %vm232, 1, 0
          %v265 = vsel %vm233, 1, 0
          %v266 = vsel %vm234, 1, 0
          %v267 = vsel %vm235, 1, 0
          %v268 = vsel %vm236, 1, 0
          %v269 = vsel %vm237, 1, 0
          %v270 = vsel %vm238, 1, 0
          %v271 = vsel %vm239, 1, 0
          %v272 = vsel %vm240, 1, 0
          %v273 = vsel %vm241, 1, 0
          %v274 = vcvt.s32.f32 %v242
          %v275 = vcvt.s32.f32 %v243
          %v276 = vcvt.s32.f32 %v244
          %v277 = vcvt.s32.f32 %v245
          %v278 = vcvt.s32.f32 %v246
          %v279 = vcvt.s32.f32 %v247
          %v280 = vcvt.s32.f32 %v248
          %v281 = vcvt.s32.f32 %v249
          %v282 = vcvt.s32.f32 %v250
          %v283 = vcvt.s32.f32 %v251
          %v284 = vcvt.s32.f32 %v252
          %v285 = vcvt.s32.f32 %v253
          %v286 = vcvt.s32.f32 %v254
          %v287 = vcvt.s32.f32 %v255
          %v288 = vcvt.s32.f32 %v256
          %v289 = vcvt.s32.f32 %v257
          %v290 = vcvt.s32.f32 %v258
          %v291 = vcvt.s32.f32 %v259
          %v292 = vcvt.s32.f32 %v260
          %v293 = vcvt.s32.f32 %v261
          %v294 = vcvt.s32.f32 %v262
          %v295 = vcvt.s32.f32 %v263
          %v296 = vcvt.s32.f32 %v264
          %v297 = vcvt.s32.f32 %v265
          %v298 = vcvt.s32.f32 %v266
          %v299 = vcvt.s32.f32 %v267
          %v300 = vcvt.s32.f32 %v268
          %v301 = vcvt.s32.f32 %v269
          %v302 = vcvt.s32.f32 %v270
          %v303 = vcvt.s32.f32 %v271
          %v304 = vcvt.s32.f32 %v272
          %v305 = vcvt.s32.f32 %v273
          %306 = vmatprep.subr.mxu0 %v275
          %307 = vmatpush1.msra.mxu0 %v274
          %308 = vmatprep.subr.mxu0 %v277
          %309 = vmatpush1.msra.mxu0 %v276
          %310 = vmatprep.subr.mxu0 %v279
          %311 = vmatpush1.msra.mxu0 %v278
          %312 = vmatprep.subr.mxu0 %v281
          %313 = vmatpush1.msra.mxu0 %v280
          %314 = vmatprep.subr.mxu0 %v283
          %315 = vmatpush1.msra.mxu0 %v282
          %316 = vmatprep.subr.mxu0 %v285
          %317 = vmatpush1.msra.mxu0 %v284
          %318 = vmatprep.subr.mxu0 %v287
          %319 = vmatpush1.msra.mxu0 %v286
          %320 = vmatprep.subr.mxu0 %v289
          %321 = vmatpush1.msra.mxu0 %v288
          %322 = vmatprep.subr.mxu0 %v291
          %323 = vmatpush1.msra.mxu0 %v290
          %324 = vmatprep.subr.mxu0 %v293
          %325 = vmatpush1.msra.mxu0 %v292
          %326 = vmatprep.subr.mxu0 %v295
          %327 = vmatpush1.msra.mxu0 %v294
          %328 = vmatprep.subr.mxu0 %v297
          %329 = vmatpush1.msra.mxu0 %v296
          %330 = vmatprep.subr.mxu0 %v299
          %331 = vmatpush1.msra.mxu0 %v298
          %332 = vmatprep.subr.mxu0 %v301
          %333 = vmatpush1.msra.mxu0 %v300
          %334 = vmatprep.subr.mxu0 %v303
          %335 = vmatpush1.msra.mxu0 %v302
          %336 = vmatprep.subr.mxu0 %v305
          %337 = vmatpush1.msra.mxu0 %v304
          %338 = vmatprep.subr.mxu0 0.0
          %339 = vmatpush1.msra.mxu0 0.0
          %340 = vmatprep.subr.mxu0 0.0
          %341 = vmatpush1.msra.mxu0 0.0
          %342 = vmatprep.subr.mxu0 0.0
          %343 = vmatpush1.msra.mxu0 0.0
          %344 = vmatprep.subr.mxu0 0.0
          %345 = vmatpush1.msra.mxu0 0.0
          %346 = vmatprep.subr.mxu0 0.0
          %347 = vmatpush1.msra.mxu0 0.0
          %348 = vmatprep.subr.mxu0 0.0
          %349 = vmatpush1.msra.mxu0 0.0
          %350 = vmatprep.subr.mxu0 0.0
          %351 = vmatpush1.msra.mxu0 0.0
          %352 = vmatprep.subr.mxu0 0.0
          %353 = vmatpush1.msra.mxu0 0.0
          %354 = vmatprep.subr.mxu0 0.0
          %355 = vmatpush1.msra.mxu0 0.0
          %356 = vmatprep.subr.mxu0 0.0
          %357 = vmatpush1.msra.mxu0 0.0
          %358 = vmatprep.subr.mxu0 0.0
          %359 = vmatpush1.msra.mxu0 0.0
          %360 = vmatprep.subr.mxu0 0.0
          %361 = vmatpush1.msra.mxu0 0.0
          %362 = vmatprep.subr.mxu0 0.0
          %363 = vmatpush1.msra.mxu0 0.0
          %364 = vmatprep.subr.mxu0 0.0
          %365 = vmatpush1.msra.mxu0 0.0
          %366 = vmatprep.subr.mxu0 0.0
          %367 = vmatpush1.msra.mxu0 0.0
          %368 = vmatprep.subr.mxu0 0.0
          %369 = vmatpush1.msra.mxu0 0.0
          %370 = vmatprep.mubr.f32.mxu0 0.0
          %371 = vmatmul.mubr.f32.gmra.mrb[0].mxu0 %v199
          %v372 = vpop.f32.mrb[0].mxu0
          %v373 = vadd.f32 0.0, %v372
          %v374 = vpop.f32.mrb[0].mxu0
          %v375 = vadd.f32 0.0, %v374
          %376 = vdwg.mxu0
          %v377 = vadd.f32 %v191, %v373
          %v378 = vadd.f32 %v192, %v375
        $region37: #{tpu_custom_call.1} parent=27 // loop_footer
          %s188 = sadd.s32 %s186, 1
        $region38: #{tpu_custom_call.1} parent=27 // loop_footer_branch
          %185 = sbr.rel target = $region34
        $region39: #{tpu_custom_call.1} parent=27 // loop_exit
          _
        %v381 = vcombine.low %v191, %v192
        %v383 = vunpack.c.l.s4 1983009808
        %v384 = vunpack.c.0.s8 %v383
        %v385 = vlaneseq
        %v386 = vshrl.u32 %v385, 7
        %v387 = vsub.s32 %v384, %v386
        %v388 = vrot.slane %v381, %v387
        %390 = vst [vmem:[%s158] sm:$0xf] %v388
        %s391 = sand.u32 %s82, 1
        %s392 = scalar_lea.sflag [#allocation7], %s391
        %s393 = sand.u32 %s82, 1
        %s394 = smul.addr %s393, 4
        %s395 = scalar_lea.vmem [#allocation8], %s394
        // Predicated region
        $region40: #{tpu_custom_call.1} parent=27 // pred_check
          %p396 = pneg %p92
        $region41: #{tpu_custom_call.1} parent=27 // pred_check_branch
          %398 = sbr.rel (%p396) target = $region43
        $region42: #{tpu_custom_call.1} parent=27 // pred_region
          %s399 = smul.u32 2, %s27
          %s401 = ssub.s32 64, 64
          %402 = vsyncadd %s392, %s401
          %s403 = smul.addr %s399, 32
          %s404 = scalar_lea.hbm %s4, %s403
          %s406 = sshll.u32 %s395, 4
          %s407 = int_to_ptr.vmem [resolvable:$true] %s406
          %409 = dma.vmem_to_hbm [thread:$0]  %s407, 64, %s404, %s392
        $region43: #{tpu_custom_call.1} parent=27 // pred_fallthru
          _
      $region28: #{tpu_custom_call.1} parent=5 // pred_fallthru
        _
      %p410 = scmp.le.s32.totalorder 2, %s22
      // Predicated region
      $region44: #{tpu_custom_call.1} parent=5 // pred_check
        %p411 = pneg %p410
      $region45: #{tpu_custom_call.1} parent=5 // pred_check_branch
        %413 = sbr.rel (%p411) target = $region47
      $region46: #{tpu_custom_call.1} parent=5 // pred_region
        %s414 = ssub.s32 %s22, 2
        // Predicated region
        $region48: #{tpu_custom_call.1} parent=46 // pred_check
          %p415 = pneg %p98
        $region49: #{tpu_custom_call.1} parent=46 // pred_check_branch
          %417 = sbr.rel (%p415) target = $region51
        $region50: #{tpu_custom_call.1} parent=46 // pred_region
          %s418 = sand.u32 %s83, 1
          %s419 = scalar_lea.sflag [#allocation7], %s418
          %s420 = sand.u32 %s83, 1
          %s421 = smul.addr %s420, 4
          %s422 = scalar_lea.vmem [#allocation8], %s421
          %423 = dma.done %s419, 64
        $region51: #{tpu_custom_call.1} parent=46 // pred_fallthru
          _
      $region47: #{tpu_custom_call.1} parent=5 // pred_fallthru
        _
    $region6: #{tpu_custom_call.1} parent=1 // loop_footer
      %s26 = sadd.s32 1, %s22
    $region7: #{tpu_custom_call.1} parent=1 // loop_footer_branch
      %21 = sbr.rel target = $region3
    $region8: #{tpu_custom_call.1} parent=1 // loop_exit
      _
    %424 = vsyncpa [#allocation6], 1
    %s425 = scalar_lea.sflag [#allocation6], 1
    %426 = vsyncpa %s425, 1
    %427 = vsyncpa [#allocation7], 1
    %s428 = scalar_lea.sflag [#allocation7], 1
    %429 = vsyncpa %s428, 1

</llo_original>
